<compile_context>
chip_gen: v5e
topology: v5e:2x2
jax: 0.10.0
libtpu: 0.0.40
codegen_flags: <defaults>
</compile_context>

<pallas_src>
import functools

import jax
import jax.numpy as jnp
from jax.experimental import pallas as pl
from jax.experimental.pallas import tpu as pltpu

INPUT_DIM = 10
HIDDEN_DIM = 16
OUT_DIM = 6

# Packed-parameter slab layout (f32, width = HIDDEN_DIM = 16).
# Each section starts on a sublane-aligned (multiple-of-8) row.
SLAB_W = HIDDEN_DIM
W1_ROW = 0                    # rows [0, 10)  : w1   (10, 16)
B1_ROW = 16                   # row  16       : b1   (1, 16)
W2_ROW = 24                   # rows [24, 40) : w2p  (16, 16) reordered/padded
B2_ROW = 40                   # row  40       : b2p  (1, 16)  reordered/padded
SLAB_ROWS = 48
PAIR_W = 8                    # padded logits width: [l0 l2 l4 0 | l1 l3 l5 0]


def _round_up(x, m):
    return (x + m - 1) // m * m


def gatenet_kernel(x_ref, p_ref, out_ref):
    x = x_ref[...]                                        # (TILE, 10) f32

    # Static ref-slices of the parameter slab (zero-cost views).
    w1 = p_ref[W1_ROW:W1_ROW + INPUT_DIM, :]              # (10, 16)
    b1 = p_ref[B1_ROW:B1_ROW + 1, :]                      # (1, 16)
    w2 = p_ref[W2_ROW:W2_ROW + HIDDEN_DIM, 0:PAIR_W]      # (16, 8)
    b2 = p_ref[B2_ROW:B2_ROW + 1, 0:PAIR_W]               # (1, 8)

    # MLP hot path: one MXU pass per matmul, VPU relu.
    h = jnp.dot(x, w1, preferred_element_type=jnp.float32) + b1   # (TILE, 16)
    h = jnp.maximum(h, 0.0)
    logits = jnp.dot(h, w2, preferred_element_type=jnp.float32) + b2  # (TILE, 8)

    # Three 2-way softmaxes == sigmoid of the logit difference, vectorized
    # over all pairs at once.  Pad lanes (cols 3/7) carry harmless 0.5s.
    la = logits[:, 0:4]       # first logit of each pair  (l0, l2, l4, pad)
    lb = logits[:, 4:8]       # second logit of each pair (l1, l3, l5, pad)
    p_first = 1.0 / (1.0 + jnp.exp(lb - la))              # one EUP exp / lane
    out_ref[:, 0:4] = p_first
    out_ref[:, 4:8] = 1.0 - p_first


def pack_params(w1, b1, w2, b2):
    """Pack (in, out)-layout weights into one (48, 16) f32 slab.

    w1: (10, 16), b1: (16,), w2: (16, 6), b2: (6,)  — already transposed from
    PyTorch's (out, in) layout, i.e. the kernel computes y = x @ W + b.
    The logit columns are reordered so pair-first logits land in cols 0..2
    and pair-second logits in cols 4..6 (cols 3/7 are zero padding).
    """
    w1 = w1.astype(jnp.float32)
    b1 = b1.astype(jnp.float32)
    w2 = w2.astype(jnp.float32)
    b2 = b2.astype(jnp.float32)

    slab = jnp.zeros((SLAB_ROWS, SLAB_W), jnp.float32)
    slab = slab.at[W1_ROW:W1_ROW + INPUT_DIM, :].set(w1)
    slab = slab.at[B1_ROW, :].set(b1)
    slab = slab.at[W2_ROW:W2_ROW + HIDDEN_DIM, 0:3].set(w2[:, 0:OUT_DIM:2])
    slab = slab.at[W2_ROW:W2_ROW + HIDDEN_DIM, 4:7].set(w2[:, 1:OUT_DIM:2])
    slab = slab.at[B2_ROW, 0:3].set(b2[0:OUT_DIM:2])
    slab = slab.at[B2_ROW, 4:7].set(b2[1:OUT_DIM:2])
    return slab


def gatenet_forward_batched(states, w1, b1, w2, b2, *, tile=256):
    """states: (B, 10) f32.  Returns (probs_q0, probs_q1, probs_q2), each (B, 2)."""
    B = states.shape[0]
    states = states.astype(jnp.float32)
    slab = pack_params(w1, b1, w2, b2)

    tile = min(tile, _round_up(B, 8))
    b_pad = _round_up(B, tile)
    if b_pad != B:
        states = jnp.pad(states, ((0, b_pad - B), (0, 0)))
    grid = (b_pad // tile,)

    out = pl.pallas_call(
        gatenet_kernel,
        out_shape=jax.ShapeDtypeStruct((b_pad, PAIR_W), jnp.float32),
        grid=grid,
        in_specs=[
            pl.BlockSpec((tile, INPUT_DIM), lambda i: (i, 0)),
            pl.BlockSpec((SLAB_ROWS, SLAB_W), lambda i: (0, 0)),  # resident params
        ],
        out_specs=pl.BlockSpec((tile, PAIR_W), lambda i: (i, 0)),
        compiler_params=pltpu.CompilerParams(
            dimension_semantics=("parallel",)),  # megacore split on v7x
    )(states, slab)

    out = out[:B]
    # cols 0..2 = p(first logit) of pairs q0/q1/q2, cols 4..6 = p(second logit)
    probs = jnp.stack([out[:, 0:3], out[:, 4:7]], axis=-1)  # (B, 3, 2)
    return probs[:, 0, :], probs[:, 1, :], probs[:, 2, :]


def gatenet_forward(state, w1, b1, w2, b2):
    """Single-state path matching PyTorch GateNet.forward: (10,) -> three (2,)."""
    # TODO(synk): for RL-style per-step rollouts, fuse GateNet into the caller's
    # kernel (weights stay resident in VMEM) instead of one pallas_call per step.
    p0, p1, p2 = gatenet_forward_batched(
        state.reshape(1, INPUT_DIM), w1, b1, w2, b2, tile=8)
    return p0[0], p1[0], p2[0]


def init_params(key):
    """Deterministic init mimicking PyTorch nn.Linear default U(-1/sqrt(fan_in), +)."""
    k1, k2, k3, k4 = jax.random.split(key, 4)
    bound1 = 1.0 / (INPUT_DIM ** 0.5)
    bound2 = 1.0 / (HIDDEN_DIM ** 0.5)
    # stored as (in, out) — already transposed relative to PyTorch's (out, in)
    w1 = jax.random.uniform(k1, (INPUT_DIM, HIDDEN_DIM),
                            minval=-bound1, maxval=bound1, dtype=jnp.float32)
    b1 = jax.random.uniform(k2, (HIDDEN_DIM,),
                            minval=-bound1, maxval=bound1, dtype=jnp.float32)
    w2 = jax.random.uniform(k3, (HIDDEN_DIM, OUT_DIM),
                            minval=-bound2, maxval=bound2, dtype=jnp.float32)
    b2 = jax.random.uniform(k4, (OUT_DIM,),
                            minval=-bound2, maxval=bound2, dtype=jnp.float32)
    return w1, b1, w2, b2


if __name__ == "__main__":
    key = jax.random.PRNGKey(0)
    key_x, key_p = jax.random.split(key)
    w1, b1, w2, b2 = init_params(key_p)

    # Batched throughput path: 512 states -> 2 grid steps at tile=256.
    B = 512
    states = jax.random.normal(key_x, (B, INPUT_DIM), dtype=jnp.float32)

    fwd = jax.jit(functools.partial(gatenet_forward_batched, tile=256))
    p_q0, p_q1, p_q2 = fwd(states, w1, b1, w2, b2)
    jax.block_until_ready((p_q0, p_q1, p_q2))

    # Pure-JAX reference (same math as the PyTorch module).
    h_ref = jnp.maximum(states @ w1 + b1, 0.0)
    logits_ref = h_ref @ w2 + b2
    ref = jax.nn.softmax(logits_ref.reshape(B, 3, 2), axis=-1)

    for idx, p in enumerate((p_q0, p_q1, p_q2)):
        assert p.shape == (B, 2)
        assert jnp.allclose(jnp.sum(p, axis=-1), 1.0, atol=1e-5)
        assert jnp.allclose(p, ref[:, idx, :], atol=1e-5, rtol=1e-5)

    # Single-state path (original module semantics: (10,) -> three (2,)).
    q0, q1, q2 = gatenet_forward(states[0], w1, b1, w2, b2)
    jax.block_until_ready((q0, q1, q2))
    assert q0.shape == (2,) and q1.shape == (2,) and q2.shape == (2,)
    assert jnp.allclose(jnp.stack([q0, q1, q2]), ref[0], atol=1e-5, rtol=1e-5)

    print("KERNEL_OK")
</pallas_src>

<mosaic_0001>
module attributes {stable_mosaic.version = 11 : i64} {
  func.func @gatenet_kernel(%arg0: i32, %arg1: memref<256x10xf32, #tpu.memory_space<vmem>>, %arg2: memref<48x16xf32, #tpu.memory_space<vmem>>, %arg3: memref<256x8xf32, #tpu.memory_space<vmem>>) attributes {dimension_semantics = [#tpu.dimension_semantics<parallel>], iteration_bounds = array<i64: 2>, scalar_prefetch = 0 : i64, scratch_operands = 0 : i64, tpu.core_type = #tpu.core_type<tc>, window_params = [{transform_indices = @transform_0, window_bounds = array<i64: 256, 10>}, {pipeline_mode = #tpu.pipeline_mode<synchronous>, transform_indices = @transform_1, window_bounds = array<i64: 48, 16>}, {transform_indices = @transform_2, window_bounds = array<i64: 256, 8>}]} {
    %c0 = arith.constant 0 : index
    %c0_0 = arith.constant 0 : index
    %0 = vector.load %arg1[%c0, %c0_0] : memref<256x10xf32, #tpu.memory_space<vmem>>, vector<256x10xf32>
    %c0_1 = arith.constant 0 : index
    %c0_2 = arith.constant 0 : index
    %1 = vector.load %arg2[%c0_1, %c0_2] : memref<48x16xf32, #tpu.memory_space<vmem>>, vector<10x16xf32>
    %c16 = arith.constant 16 : index
    %c0_3 = arith.constant 0 : index
    %2 = vector.load %arg2[%c16, %c0_3] : memref<48x16xf32, #tpu.memory_space<vmem>>, vector<1x16xf32>
    %c24 = arith.constant 24 : index
    %c0_4 = arith.constant 0 : index
    %3 = vector.load %arg2[%c24, %c0_4] : memref<48x16xf32, #tpu.memory_space<vmem>>, vector<16x8xf32>
    %c40 = arith.constant 40 : index
    %c0_5 = arith.constant 0 : index
    %4 = vector.load %arg2[%c40, %c0_5] : memref<48x16xf32, #tpu.memory_space<vmem>>, vector<1x8xf32>
    %cst = arith.constant dense<0.000000e+00> : vector<256x16xf32>
    %5 = tpu.matmul %0, %1, %cst {dimension_numbers = #tpu.dot_dimension_numbers<[1], [0], [0], [1], [0, 0, 1, 1], [], []>} : vector<256x10xf32>, vector<10x16xf32>, vector<256x16xf32> -> vector<256x16xf32>
    %6 = vector.broadcast %2 : vector<1x16xf32> to vector<256x16xf32>
    %7 = arith.addf %5, %6 : vector<256x16xf32>
    %cst_6 = arith.constant 0.000000e+00 : f32
    %8 = vector.broadcast %cst_6 : f32 to vector<256x16xf32>
    %9 = arith.maximumf %7, %8 : vector<256x16xf32>
    %cst_7 = arith.constant dense<0.000000e+00> : vector<256x8xf32>
    %10 = tpu.matmul %9, %3, %cst_7 {dimension_numbers = #tpu.dot_dimension_numbers<[1], [0], [0], [1], [0, 0, 1, 1], [], []>} : vector<256x16xf32>, vector<16x8xf32>, vector<256x8xf32> -> vector<256x8xf32>
    %11 = vector.broadcast %4 : vector<1x8xf32> to vector<256x8xf32>
    %12 = arith.addf %10, %11 : vector<256x8xf32>
    %13 = vector.extract_strided_slice %12 {offsets = [0, 0], sizes = [256, 4], strides = [1, 1]} : vector<256x8xf32> to vector<256x4xf32>
    %14 = vector.extract_strided_slice %12 {offsets = [0, 4], sizes = [256, 4], strides = [1, 1]} : vector<256x8xf32> to vector<256x4xf32>
    %15 = arith.subf %14, %13 : vector<256x4xf32>
    %16 = math.exp %15 : vector<256x4xf32>
    %cst_8 = arith.constant 1.000000e+00 : f32
    %17 = vector.broadcast %cst_8 : f32 to vector<256x4xf32>
    %18 = arith.addf %17, %16 : vector<256x4xf32>
    %cst_9 = arith.constant 1.000000e+00 : f32
    %19 = vector.broadcast %cst_9 : f32 to vector<256x4xf32>
    %20 = arith.divf %19, %18 : vector<256x4xf32>
    %c0_10 = arith.constant 0 : index
    %c0_11 = arith.constant 0 : index
    %21 = vector.load %arg3[%c0_10, %c0_11] : memref<256x8xf32, #tpu.memory_space<vmem>>, vector<256x4xf32>
    tpu.vector_store %arg3[%c0_10, %c0_11], %20 {strides = array<i32>} : memref<256x8xf32, #tpu.memory_space<vmem>>, vector<256x4xf32>,
    %cst_12 = arith.constant 1.000000e+00 : f32
    %22 = vector.broadcast %cst_12 : f32 to vector<256x4xf32>
    %23 = arith.subf %22, %20 : vector<256x4xf32>
    %c0_13 = arith.constant 0 : index
    %c4 = arith.constant 4 : index
    %24 = vector.load %arg3[%c0_13, %c4] : memref<256x8xf32, #tpu.memory_space<vmem>>, vector<256x4xf32>
    tpu.vector_store %arg3[%c0_13, %c4], %23 {strides = array<i32>} : memref<256x8xf32, #tpu.memory_space<vmem>>, vector<256x4xf32>,
    return
  }
  func.func @transform_0(%arg0: i32) -> (i32, i32) {
    %c0_i32 = arith.constant 0 : i32
    %c0_i32_0 = arith.constant 0 : i32
    return %arg0, %c0_i32 : i32, i32
  }
  func.func @transform_1(%arg0: i32) -> (i32, i32) {
    %c0_i32 = arith.constant 0 : i32
    %c0_i32_0 = arith.constant 0 : i32
    %c0_i32_1 = arith.constant 0 : i32
    return %c0_i32, %c0_i32_0 : i32, i32
  }
  func.func @transform_2(%arg0: i32) -> (i32, i32) {
    %c0_i32 = arith.constant 0 : i32
    %c0_i32_0 = arith.constant 0 : i32
    return %arg0, %c0_i32 : i32, i32
  }
}

</mosaic_0001>

<llo_original>
// kernel: gatenet_forward_batched.1
$region0: #{gatenet_forward_batched.1}
  #allocation0 [shape = 'u32[]', space=smem, size = 0x4, offset = 0x4, fixed_abs, tag = 'smem constant byte address 0x4 - core index']
  #allocation1 [shape = 'u32[72,128]{1,0:T(1,128)}', space=vmem, size = 0x9000, scoped, tag = 'internal scratch']
  %s0 = inlined_call_operand.vmem [shape: f32[512,10], index: 0, kind: input, shape index: {}]
  %s1 = inlined_call_operand.vmem [shape: f32[48,16], index: 1, kind: input, shape index: {}]
  %s2 = inlined_call_operand.vmem [shape: f32[512,8], index: 2, kind: output, shape index: {}]
  %s3 = sld [smem:[#allocation0]]
  $region41: #{gatenet_forward_batched.1} parent=0
    _
  %s5 = ssub.s32 1, %s3
  %s6 = scalar_select 0, %s5, %s3
  loop: start=0, step=1, limit=4
  $region2: #{gatenet_forward_batched.1} parent=0 // loop_pre_header
    _
  $region3: #{gatenet_forward_batched.1} parent=0 // loop_header
    %s8 = sphi 0, %s12
    %p9 = scmp.ge.s32.totalorder %s8, 4
    %s18 = sphi 0, %s20
    %s21 = sphi 0, %s18
    %s22 = sphi 0, %s21
    %s38 = sphi 0, %s22
    %s42 = sphi 0, %s42
    %s44 = sphi 0, %s42
    %s45 = sphi 0, %s44
    %s59 = sphi 0, %s45
    %s65 = sphi 0, %s67
    %s68 = sphi 0, %s65
    %s69 = sphi 0, %s68
    %s85 = sphi 0, %s69
  $region4: #{gatenet_forward_batched.1} parent=0 // loop_header_branch
    %11 = sbr.rel (%p9) target = $region8
  $region5: #{gatenet_forward_batched.1} parent=0 // loop_body
    %s13 = ssub.s32 %s8, 1
    %s14 = ssub.s32 %s8, 2
    %s15 = sadd.s32 %s8, 1
    %s16 = ssub.s32 %s8, %s15
    %p17 = scmp.eq.s32.totalorder %s16, 0
    %s19 = sadd.s32 %s18, 1
    %s20 = scalar_select %p17, %s18, %s19
    %p23 = pneg %p17
    %p24 = scmp.eq.s32.totalorder %s8, 1
    %p25 = por %p23, %p24
    %p26 = scmp.ne.s32.totalorder %s18, %s21
    %p27 = scmp.eq.s32.totalorder %s8, 0
    %p28 = por %p26, %p27
    %p29 = scmp.ne.s32.totalorder %s18, %s21
    %p30 = scmp.eq.s32.totalorder %s13, 1
    %p31 = por %p29, %p30
    %p32 = scmp.ne.s32.totalorder %s21, %s22
    %p33 = scmp.eq.s32.totalorder %s13, 0
    %p34 = por %p32, %p33
    %p35 = scmp.ne.s32.totalorder %s21, %s22
    %p36 = scmp.eq.s32.totalorder %s14, 1
    %p37 = por %p35, %p36
    %p39 = scmp.ne.s32.totalorder %s22, %s38
    %p40 = scmp.eq.s32.totalorder %s14, 0
    %p41 = por %p39, %p40
    %s43 = sadd.s32 %s42, 1
    %p46 = scmp.eq.s32.totalorder %s8, 1
    %p47 = scmp.ne.s32.totalorder %s42, %s44
    %p48 = scmp.eq.s32.totalorder %s8, 0
    %p49 = por %p47, %p48
    %p50 = scmp.ne.s32.totalorder %s42, %s44
    %p51 = scmp.eq.s32.totalorder %s13, 1
    %p52 = por %p50, %p51
    %p53 = scmp.ne.s32.totalorder %s44, %s45
    %p54 = scmp.eq.s32.totalorder %s13, 0
    %p55 = por %p53, %p54
    %p56 = scmp.ne.s32.totalorder %s44, %s45
    %p57 = scmp.eq.s32.totalorder %s14, 1
    %p58 = por %p56, %p57
    %p60 = scmp.ne.s32.totalorder %s45, %s59
    %p61 = scmp.eq.s32.totalorder %s14, 0
    %p62 = por %p60, %p61
    %s63 = ssub.s32 %s8, %s15
    %p64 = scmp.eq.s32.totalorder %s63, 0
    %s66 = sadd.s32 %s65, 1
    %s67 = scalar_select %p64, %s65, %s66
    %p70 = pneg %p64
    %p71 = scmp.eq.s32.totalorder %s8, 1
    %p72 = por %p70, %p71
    %p73 = scmp.ne.s32.totalorder %s65, %s68
    %p74 = scmp.eq.s32.totalorder %s8, 0
    %p75 = por %p73, %p74
    %p76 = scmp.ne.s32.totalorder %s65, %s68
    %p77 = scmp.eq.s32.totalorder %s13, 1
    %p78 = por %p76, %p77
    %p79 = scmp.ne.s32.totalorder %s68, %s69
    %p80 = scmp.eq.s32.totalorder %s13, 0
    %p81 = por %p79, %p80
    %p82 = scmp.ne.s32.totalorder %s68, %s69
    %p83 = scmp.eq.s32.totalorder %s14, 1
    %p84 = por %p82, %p83
    %p86 = scmp.ne.s32.totalorder %s69, %s85
    %p87 = scmp.eq.s32.totalorder %s14, 0
    %p88 = por %p86, %p87
    %p89 = scmp.le.s32.totalorder 1, %s8
    %p90 = scmp.lt.s32.totalorder %s8, 3
    %p91 = pnand %p89, %p90
    %p92 = pneg %p91
    // Predicated region
    $region9: #{gatenet_forward_batched.1} parent=5 // pred_check
      _
    $region10: #{gatenet_forward_batched.1} parent=5 // pred_check_branch
      %94 = sbr.rel (%p91) target = $region12
    $region11: #{gatenet_forward_batched.1} parent=5 // pred_region
      %s95 = ssub.s32 %s8, 1
      // Predicated region
      $region13: #{gatenet_forward_batched.1} parent=11 // pred_check
        %p96 = pneg %p55
      $region14: #{gatenet_forward_batched.1} parent=11 // pred_check_branch
        %98 = sbr.rel (%p96) target = $region16
      $region15: #{gatenet_forward_batched.1} parent=11 // pred_region
        _
      $region16: #{gatenet_forward_batched.1} parent=11 // pred_fallthru
        _
    $region12: #{gatenet_forward_batched.1} parent=5 // pred_fallthru
      _
    %p99 = scmp.lt.s32.totalorder %s8, 2
    // Predicated region
    $region17: #{gatenet_forward_batched.1} parent=5 // pred_check
      %p100 = pneg %p99
    $region18: #{gatenet_forward_batched.1} parent=5 // pred_check_branch
      %102 = sbr.rel (%p100) target = $region20
    $region19: #{gatenet_forward_batched.1} parent=5 // pred_region
      // Predicated region
      $region21: #{gatenet_forward_batched.1} parent=19 // pred_check
        %p103 = pneg %p28
      $region22: #{gatenet_forward_batched.1} parent=19 // pred_check_branch
        %105 = sbr.rel (%p103) target = $region24
      $region23: #{gatenet_forward_batched.1} parent=19 // pred_region
        %s106 = smul.u32 32, %s8
        %p107 = scmp.lt.s32.totalorder %s106, 63
        %s108 = scalar_select %p107, %s106, 63
        %s109 = smul.addr %s108, 8
        %s110 = scalar_lea.vmem %s0, %s109
        %s111 = smul.u32 32, %s8
      $region24: #{gatenet_forward_batched.1} parent=19 // pred_fallthru
        _
    $region20: #{gatenet_forward_batched.1} parent=5 // pred_fallthru
      _
    %p112 = scmp.le.s32.totalorder 1, %s8
    %p113 = scmp.lt.s32.totalorder %s8, 3
    %p114 = pnand %p112, %p113
    %p115 = pneg %p114
    // Predicated region
    $region25: #{gatenet_forward_batched.1} parent=5 // pred_check
      _
    $region26: #{gatenet_forward_batched.1} parent=5 // pred_check_branch
      %117 = sbr.rel (%p114) target = $region28
    $region27: #{gatenet_forward_batched.1} parent=5 // pred_region
      %s118 = ssub.s32 %s8, 1
      %s119 = smul.u32 32, %s13
      %p120 = scmp.lt.s32.totalorder %s119, 63
      %s121 = scalar_select %p120, %s119, 63
      %s122 = smul.addr %s121, 8
      %s123 = scalar_lea.vmem %s0, %s122
      %p124 = pneg %p34
      %p125 = pneg %p31
      %p126 = pneg %p55
      %p127 = pneg %p52
      %p128 = pneg %p81
      %p129 = pneg %p78
      %s130 = smul.u32 32, %s13
      %p131 = scmp.lt.s32.totalorder %s130, 63
      %s132 = scalar_select %p131, %s130, 63
      %s133 = smul.addr %s132, 8
      %s134 = scalar_lea.vmem %s2, %s133
      %s135 = smul.u32 32, %s13
      %p136 = scmp.lt.s32.totalorder %s135, 63
      %s137 = scalar_select %p136, %s135, 63
      %s138 = smul.addr %s137, 8
      %s139 = scalar_lea.vmem %s0, %s138
      %s140 = smul.u32 32, %s13
      %s141 = smul.u32 32, %s13
      %p142 = scmp.lt.s32.totalorder %s141, 63
      %s143 = scalar_select %p142, %s141, 63
      %s144 = smul.addr %s143, 8
      %s145 = scalar_lea.vmem %s2, %s144
      %s146 = smul.u32 32, %s13
      %v147 = vld [vmem:[%s139] sm:$0xff]
      %v148 = vld [vmem:[%s139 + $0x8] sm:$0xff]
      %v149 = vld [vmem:[%s139 + $0x10] sm:$0xff]
      %v150 = vld [vmem:[%s139 + $0x18] sm:$0xff]
      %v151 = vld [vmem:[%s139 + $0x20] sm:$0xff]
      %v152 = vld [vmem:[%s139 + $0x28] sm:$0xff]
      %v153 = vld [vmem:[%s139 + $0x30] sm:$0xff]
      %v154 = vld [vmem:[%s139 + $0x38] sm:$0xff]
      %v155 = vld [vmem:[%s139 + $0x40] sm:$0xff]
      %v156 = vld [vmem:[%s139 + $0x48] sm:$0xff]
      %v157 = vld [vmem:[%s139 + $0x50] sm:$0xff]
      %v158 = vld [vmem:[%s139 + $0x58] sm:$0xff]
      %v159 = vld [vmem:[%s139 + $0x60] sm:$0xff]
      %v160 = vld [vmem:[%s139 + $0x68] sm:$0xff]
      %v161 = vld [vmem:[%s139 + $0x70] sm:$0xff]
      %v162 = vld [vmem:[%s139 + $0x78] sm:$0xff]
      %v163 = vld [vmem:[%s139 + $0x80] sm:$0xff]
      %v164 = vld [vmem:[%s139 + $0x88] sm:$0xff]
      %v165 = vld [vmem:[%s139 + $0x90] sm:$0xff]
      %v166 = vld [vmem:[%s139 + $0x98] sm:$0xff]
      %v167 = vld [vmem:[%s139 + $0xa0] sm:$0xff]
      %v168 = vld [vmem:[%s139 + $0xa8] sm:$0xff]
      %v169 = vld [vmem:[%s139 + $0xb0] sm:$0xff]
      %v170 = vld [vmem:[%s139 + $0xb8] sm:$0xff]
      %v171 = vld [vmem:[%s139 + $0xc0] sm:$0xff]
      %v172 = vld [vmem:[%s139 + $0xc8] sm:$0xff]
      %v173 = vld [vmem:[%s139 + $0xd0] sm:$0xff]
      %v174 = vld [vmem:[%s139 + $0xd8] sm:$0xff]
      %v175 = vld [vmem:[%s139 + $0xe0] sm:$0xff]
      %v176 = vld [vmem:[%s139 + $0xe8] sm:$0xff]
      %v177 = vld [vmem:[%s139 + $0xf0] sm:$0xff]
      %v178 = vld [vmem:[%s139 + $0xf8] sm:$0xff]
      %v179 = vld [vmem:[%s1] sm:$0xff]
      %v180 = vld [vmem:[%s1 + $0x8] sm:$0x3]
      %v181 = vld [vmem:[%s1 + $0x10] sm:$0x1]
      %v182 = vld [vmem:[%s1 + $0x18] sm:$0xff]
      %v183 = vld [vmem:[%s1 + $0x20] sm:$0xff]
      %v184 = vld [vmem:[%s1 + $0x28] sm:$0x1]
      %v185 = vperm.slane %v181, 0
      %vm186 = vcmask 80896
      %v188 = vsel %vm186, %v147, 0
      %v191 = vsel %vm186, %v148, 0
      %v194 = vsel %vm186, %v149, 0
      %v197 = vsel %vm186, %v150, 0
      %v200 = vsel %vm186, %v151, 0
      %v203 = vsel %vm186, %v152, 0
      %v206 = vsel %vm186, %v153, 0
      %v209 = vsel %vm186, %v154, 0
      %v212 = vsel %vm186, %v155, 0
      %v215 = vsel %vm186, %v156, 0
      %v218 = vsel %vm186, %v157, 0
      %v221 = vsel %vm186, %v158, 0
      %v224 = vsel %vm186, %v159, 0
      %v227 = vsel %vm186, %v160, 0
      %v230 = vsel %vm186, %v161, 0
      %v233 = vsel %vm186, %v162, 0
      %v236 = vsel %vm186, %v163, 0
      %v239 = vsel %vm186, %v164, 0
      %v242 = vsel %vm186, %v165, 0
      %v245 = vsel %vm186, %v166, 0
      %v248 = vsel %vm186, %v167, 0
      %v251 = vsel %vm186, %v168, 0
      %v254 = vsel %vm186, %v169, 0
      %v257 = vsel %vm186, %v170, 0
      %v260 = vsel %vm186, %v171, 0
      %v263 = vsel %vm186, %v172, 0
      %v266 = vsel %vm186, %v173, 0
      %v269 = vsel %vm186, %v174, 0
      %v272 = vsel %vm186, %v175, 0
      %v275 = vsel %vm186, %v176, 0
      %v278 = vsel %vm186, %v177, 0
      %v281 = vsel %vm186, %v178, 0
      %vm283 = vcmask 1041408
      %v285 = vsel %vm283, %v180, 0
      %287 = vmatpush.msra.mxu0 0.0
      %288 = vmatpush.msra.mxu0 0.0
      %289 = vmatpush.msra.mxu0 0.0
      %290 = vmatpush.msra.mxu0 0.0
      %291 = vmatpush.msra.mxu0 0.0
      %292 = vmatpush.msra.mxu0 0.0
      %293 = vmatpush.msra.mxu0 0.0
      %294 = vmatpush.msra.mxu0 0.0
      %295 = vmatpush.msra.mxu0 0.0
      %296 = vmatpush.msra.mxu0 0.0
      %297 = vmatpush.msra.mxu0 0.0
      %298 = vmatpush.msra.mxu0 0.0
      %299 = vmatpush.msra.mxu0 0.0
      %300 = vmatpush.msra.mxu0 0.0
      %301 = vmatpush.msra.mxu0 %v285
      %302 = vmatpush.msra.mxu0 %v179
      %303 = vmatmul.f32.gmra.mxu0 %v188
      %v304 = vpop.f32.mrf.mxu0
      %v305 = vadd.f32 %v185, %v304
      %306 = vmatmul.f32.gmra.mxu0 %v191
      %v307 = vpop.f32.mrf.mxu0
      %v308 = vadd.f32 %v185, %v307
      %309 = vmatmul.f32.gmra.mxu0 %v194
      %v310 = vpop.f32.mrf.mxu0
      %v311 = vadd.f32 %v185, %v310
      %312 = vmatmul.f32.gmra.mxu0 %v197
      %v313 = vpop.f32.mrf.mxu0
      %v314 = vadd.f32 %v185, %v313
      %315 = vmatmul.f32.gmra.mxu0 %v200
      %v316 = vpop.f32.mrf.mxu0
      %v317 = vadd.f32 %v185, %v316
      %318 = vmatmul.f32.gmra.mxu0 %v203
      %v319 = vpop.f32.mrf.mxu0
      %v320 = vadd.f32 %v185, %v319
      %321 = vmatmul.f32.gmra.mxu0 %v206
      %v322 = vpop.f32.mrf.mxu0
      %v323 = vadd.f32 %v185, %v322
      %324 = vmatmul.f32.gmra.mxu0 %v209
      %v325 = vpop.f32.mrf.mxu0
      %v326 = vadd.f32 %v185, %v325
      %327 = vmatmul.f32.gmra.mxu0 %v212
      %v328 = vpop.f32.mrf.mxu0
      %v329 = vadd.f32 %v185, %v328
      %330 = vmatmul.f32.gmra.mxu0 %v215
      %v331 = vpop.f32.mrf.mxu0
      %v332 = vadd.f32 %v185, %v331
      %333 = vmatmul.f32.gmra.mxu0 %v218
      %v334 = vpop.f32.mrf.mxu0
      %v335 = vadd.f32 %v185, %v334
      %336 = vmatmul.f32.gmra.mxu0 %v221
      %v337 = vpop.f32.mrf.mxu0
      %v338 = vadd.f32 %v185, %v337
      %339 = vmatmul.f32.gmra.mxu0 %v224
      %v340 = vpop.f32.mrf.mxu0
      %v341 = vadd.f32 %v185, %v340
      %342 = vmatmul.f32.gmra.mxu0 %v227
      %v343 = vpop.f32.mrf.mxu0
      %v344 = vadd.f32 %v185, %v343
      %345 = vmatmul.f32.gmra.mxu0 %v230
      %v346 = vpop.f32.mrf.mxu0
      %v347 = vadd.f32 %v185, %v346
      %348 = vmatmul.f32.gmra.mxu0 %v233
      %v349 = vpop.f32.mrf.mxu0
      %v350 = vadd.f32 %v185, %v349
      %351 = vmatmul.f32.gmra.mxu0 %v236
      %v352 = vpop.f32.mrf.mxu0
      %v353 = vadd.f32 %v185, %v352
      %354 = vmatmul.f32.gmra.mxu0 %v239
      %v355 = vpop.f32.mrf.mxu0
      %v356 = vadd.f32 %v185, %v355
      %357 = vmatmul.f32.gmra.mxu0 %v242
      %v358 = vpop.f32.mrf.mxu0
      %v359 = vadd.f32 %v185, %v358
      %360 = vmatmul.f32.gmra.mxu0 %v245
      %v361 = vpop.f32.mrf.mxu0
      %v362 = vadd.f32 %v185, %v361
      %363 = vmatmul.f32.gmra.mxu0 %v248
      %v364 = vpop.f32.mrf.mxu0
      %v365 = vadd.f32 %v185, %v364
      %366 = vmatmul.f32.gmra.mxu0 %v251
      %v367 = vpop.f32.mrf.mxu0
      %v368 = vadd.f32 %v185, %v367
      %369 = vmatmul.f32.gmra.mxu0 %v254
      %v370 = vpop.f32.mrf.mxu0
      %v371 = vadd.f32 %v185, %v370
      %372 = vmatmul.f32.gmra.mxu0 %v257
      %v373 = vpop.f32.mrf.mxu0
      %v374 = vadd.f32 %v185, %v373
      %375 = vmatmul.f32.gmra.mxu0 %v260
      %v376 = vpop.f32.mrf.mxu0
      %v377 = vadd.f32 %v185, %v376
      %378 = vmatmul.f32.gmra.mxu0 %v263
      %v379 = vpop.f32.mrf.mxu0
      %v380 = vadd.f32 %v185, %v379
      %381 = vmatmul.f32.gmra.mxu0 %v266
      %v382 = vpop.f32.mrf.mxu0
      %v383 = vadd.f32 %v185, %v382
      %384 = vmatmul.f32.gmra.mxu0 %v269
      %v385 = vpop.f32.mrf.mxu0
      %v386 = vadd.f32 %v185, %v385
      %387 = vmatmul.f32.gmra.mxu0 %v272
      %v388 = vpop.f32.mrf.mxu0
      %v389 = vadd.f32 %v185, %v388
      %390 = vmatmul.f32.gmra.mxu0 %v275
      %v391 = vpop.f32.mrf.mxu0
      %v392 = vadd.f32 %v185, %v391
      %393 = vmatmul.f32.gmra.mxu0 %v278
      %v394 = vpop.f32.mrf.mxu0
      %v395 = vadd.f32 %v185, %v394
      %396 = vmatmul.f32.gmra.mxu0 %v281
      %v397 = vpop.f32.mrf.mxu0
      %v398 = vadd.f32 %v185, %v397
      %399 = vdwg.mxu0
      %v400 = vmax.f32 %v305, 0.0
      %v401 = vmax.f32 %v308, 0.0
      %v402 = vmax.f32 %v311, 0.0
      %v403 = vmax.f32 %v314, 0.0
      %v404 = vmax.f32 %v317, 0.0
      %v405 = vmax.f32 %v320, 0.0
      %v406 = vmax.f32 %v323, 0.0
      %v407 = vmax.f32 %v326, 0.0
      %v408 = vmax.f32 %v329, 0.0
      %v409 = vmax.f32 %v332, 0.0
      %v410 = vmax.f32 %v335, 0.0
      %v411 = vmax.f32 %v338, 0.0
      %v412 = vmax.f32 %v341, 0.0
      %v413 = vmax.f32 %v344, 0.0
      %v414 = vmax.f32 %v347, 0.0
      %v415 = vmax.f32 %v350, 0.0
      %v416 = vmax.f32 %v353, 0.0
      %v417 = vmax.f32 %v356, 0.0
      %v418 = vmax.f32 %v359, 0.0
      %v419 = vmax.f32 %v362, 0.0
      %v420 = vmax.f32 %v365, 0.0
      %v421 = vmax.f32 %v368, 0.0
      %v422 = vmax.f32 %v371, 0.0
      %v423 = vmax.f32 %v374, 0.0
      %v424 = vmax.f32 %v377, 0.0
      %v425 = vmax.f32 %v380, 0.0
      %v426 = vmax.f32 %v383, 0.0
      %v427 = vmax.f32 %v386, 0.0
      %v428 = vmax.f32 %v389, 0.0
      %v429 = vmax.f32 %v392, 0.0
      %v430 = vmax.f32 %v395, 0.0
      %v431 = vmax.f32 %v398, 0.0
      %v432 = vperm.slane %v184, 0
      %vm433 = vcmask 130048
      %v435 = vsel %vm433, %v400, 0
      %v438 = vsel %vm433, %v401, 0
      %v441 = vsel %vm433, %v402, 0
      %v444 = vsel %vm433, %v403, 0
      %v447 = vsel %vm433, %v404, 0
      %v450 = vsel %vm433, %v405, 0
      %v453 = vsel %vm433, %v406, 0
      %v456 = vsel %vm433, %v407, 0
      %v459 = vsel %vm433, %v408, 0
      %v462 = vsel %vm433, %v409, 0
      %v465 = vsel %vm433, %v410, 0
      %v468 = vsel %vm433, %v411, 0
      %v471 = vsel %vm433, %v412, 0
      %v474 = vsel %vm433, %v413, 0
      %v477 = vsel %vm433, %v414, 0
      %v480 = vsel %vm433, %v415, 0
      %v483 = vsel %vm433, %v416, 0
      %v486 = vsel %vm433, %v417, 0
      %v489 = vsel %vm433, %v418, 0
      %v492 = vsel %vm433, %v419, 0
      %v495 = vsel %vm433, %v420, 0
      %v498 = vsel %vm433, %v421, 0
      %v501 = vsel %vm433, %v422, 0
      %v504 = vsel %vm433, %v423, 0
      %v507 = vsel %vm433, %v424, 0
      %v510 = vsel %vm433, %v425, 0
      %v513 = vsel %vm433, %v426, 0
      %v516 = vsel %vm433, %v427, 0
      %v519 = vsel %vm433, %v428, 0
      %v522 = vsel %vm433, %v429, 0
      %v525 = vsel %vm433, %v430, 0
      %v528 = vsel %vm433, %v431, 0
      %530 = vmatpush.msra.mxu0 0.0
      %531 = vmatpush.msra.mxu0 0.0
      %532 = vmatpush.msra.mxu0 0.0
      %533 = vmatpush.msra.mxu0 0.0
      %534 = vmatpush.msra.mxu0 0.0
      %535 = vmatpush.msra.mxu0 0.0
      %536 = vmatpush.msra.mxu0 0.0
      %537 = vmatpush.msra.mxu0 0.0
      %538 = vmatpush.msra.mxu0 0.0
      %539 = vmatpush.msra.mxu0 0.0
      %540 = vmatpush.msra.mxu0 0.0
      %541 = vmatpush.msra.mxu0 0.0
      %542 = vmatpush.msra.mxu0 0.0
      %543 = vmatpush.msra.mxu0 0.0
      %544 = vmatpush.msra.mxu0 %v183
      %545 = vmatpush.msra.mxu0 %v182
      %546 = vmatmul.f32.gmra.mxu0 %v435
      %v547 = vpop.f32.mrf.mxu0
      %v548 = vadd.f32 %v432, %v547
      %549 = vmatmul.f32.gmra.mxu0 %v438
      %v550 = vpop.f32.mrf.mxu0
      %v551 = vadd.f32 %v432, %v550
      %552 = vmatmul.f32.gmra.mxu0 %v441
      %v553 = vpop.f32.mrf.mxu0
      %v554 = vadd.f32 %v432, %v553
      %555 = vmatmul.f32.gmra.mxu0 %v444
      %v556 = vpop.f32.mrf.mxu0
      %v557 = vadd.f32 %v432, %v556
      %558 = vmatmul.f32.gmra.mxu0 %v447
      %v559 = vpop.f32.mrf.mxu0
      %v560 = vadd.f32 %v432, %v559
      %561 = vmatmul.f32.gmra.mxu0 %v450
      %v562 = vpop.f32.mrf.mxu0
      %v563 = vadd.f32 %v432, %v562
      %564 = vmatmul.f32.gmra.mxu0 %v453
      %v565 = vpop.f32.mrf.mxu0
      %v566 = vadd.f32 %v432, %v565
      %567 = vmatmul.f32.gmra.mxu0 %v456
      %v568 = vpop.f32.mrf.mxu0
      %v569 = vadd.f32 %v432, %v568
      %570 = vmatmul.f32.gmra.mxu0 %v459
      %v571 = vpop.f32.mrf.mxu0
      %v572 = vadd.f32 %v432, %v571
      %573 = vmatmul.f32.gmra.mxu0 %v462
      %v574 = vpop.f32.mrf.mxu0
      %v575 = vadd.f32 %v432, %v574
      %576 = vmatmul.f32.gmra.mxu0 %v465
      %v577 = vpop.f32.mrf.mxu0
      %v578 = vadd.f32 %v432, %v577
      %579 = vmatmul.f32.gmra.mxu0 %v468
      %v580 = vpop.f32.mrf.mxu0
      %v581 = vadd.f32 %v432, %v580
      %582 = vmatmul.f32.gmra.mxu0 %v471
      %v583 = vpop.f32.mrf.mxu0
      %v584 = vadd.f32 %v432, %v583
      %585 = vmatmul.f32.gmra.mxu0 %v474
      %v586 = vpop.f32.mrf.mxu0
      %v587 = vadd.f32 %v432, %v586
      %588 = vmatmul.f32.gmra.mxu0 %v477
      %v589 = vpop.f32.mrf.mxu0
      %v590 = vadd.f32 %v432, %v589
      %591 = vmatmul.f32.gmra.mxu0 %v480
      %v592 = vpop.f32.mrf.mxu0
      %v593 = vadd.f32 %v432, %v592
      %594 = vmatmul.f32.gmra.mxu0 %v483
      %v595 = vpop.f32.mrf.mxu0
      %v596 = vadd.f32 %v432, %v595
      %597 = vmatmul.f32.gmra.mxu0 %v486
      %v598 = vpop.f32.mrf.mxu0
      %v599 = vadd.f32 %v432, %v598
      %600 = vmatmul.f32.gmra.mxu0 %v489
      %v601 = vpop.f32.mrf.mxu0
      %v602 = vadd.f32 %v432, %v601
      %603 = vmatmul.f32.gmra.mxu0 %v492
      %v604 = vpop.f32.mrf.mxu0
      %v605 = vadd.f32 %v432, %v604
      %606 = vmatmul.f32.gmra.mxu0 %v495
      %v607 = vpop.f32.mrf.mxu0
      %v608 = vadd.f32 %v432, %v607
      %609 = vmatmul.f32.gmra.mxu0 %v498
      %v610 = vpop.f32.mrf.mxu0
      %v611 = vadd.f32 %v432, %v610
      %612 = vmatmul.f32.gmra.mxu0 %v501
      %v613 = vpop.f32.mrf.mxu0
      %v614 = vadd.f32 %v432, %v613
      %615 = vmatmul.f32.gmra.mxu0 %v504
      %v616 = vpop.f32.mrf.mxu0
      %v617 = vadd.f32 %v432, %v616
      %618 = vmatmul.f32.gmra.mxu0 %v507
      %v619 = vpop.f32.mrf.mxu0
      %v620 = vadd.f32 %v432, %v619
      %621 = vmatmul.f32.gmra.mxu0 %v510
      %v622 = vpop.f32.mrf.mxu0
      %v623 = vadd.f32 %v432, %v622
      %624 = vmatmul.f32.gmra.mxu0 %v513
      %v625 = vpop.f32.mrf.mxu0
      %v626 = vadd.f32 %v432, %v625
      %627 = vmatmul.f32.gmra.mxu0 %v516
      %v628 = vpop.f32.mrf.mxu0
      %v629 = vadd.f32 %v432, %v628
      %630 = vmatmul.f32.gmra.mxu0 %v519
      %v631 = vpop.f32.mrf.mxu0
      %v632 = vadd.f32 %v432, %v631
      %633 = vmatmul.f32.gmra.mxu0 %v522
      %v634 = vpop.f32.mrf.mxu0
      %v635 = vadd.f32 %v432, %v634
      %636 = vmatmul.f32.gmra.mxu0 %v525
      %v637 = vpop.f32.mrf.mxu0
      %v638 = vadd.f32 %v432, %v637
      %639 = vmatmul.f32.gmra.mxu0 %v528
      %v640 = vpop.f32.mrf.mxu0
      %v641 = vadd.f32 %v432, %v640
      %642 = vdwg.mxu0
      %675 = vrot.lane.b32.xlu0 %v548, 4
      %v676 = vpop.permute.xlu0 %675
      %677 = vrot.lane.b32.xlu0 %v551, 4
      %v678 = vpop.permute.xlu0 %677
      %679 = vrot.lane.b32.xlu0 %v554, 4
      %v680 = vpop.permute.xlu0 %679
      %681 = vrot.lane.b32.xlu0 %v557, 4
      %v682 = vpop.permute.xlu0 %681
      %683 = vrot.lane.b32.xlu0 %v560, 4
      %v684 = vpop.permute.xlu0 %683
      %685 = vrot.lane.b32.xlu0 %v563, 4
      %v686 = vpop.permute.xlu0 %685
      %687 = vrot.lane.b32.xlu0 %v566, 4
      %v688 = vpop.permute.xlu0 %687
      %689 = vrot.lane.b32.xlu0 %v569, 4
      %v690 = vpop.permute.xlu0 %689
      %691 = vrot.lane.b32.xlu0 %v572, 4
      %v692 = vpop.permute.xlu0 %691
      %693 = vrot.lane.b32.xlu0 %v575, 4
      %v694 = vpop.permute.xlu0 %693
      %695 = vrot.lane.b32.xlu0 %v578, 4
      %v696 = vpop.permute.xlu0 %695
      %697 = vrot.lane.b32.xlu0 %v581, 4
      %v698 = vpop.permute.xlu0 %697
      %699 = vrot.lane.b32.xlu0 %v584, 4
      %v700 = vpop.permute.xlu0 %699
      %701 = vrot.lane.b32.xlu0 %v587, 4
      %v702 = vpop.permute.xlu0 %701
      %703 = vrot.lane.b32.xlu0 %v590, 4
      %v704 = vpop.permute.xlu0 %703
      %705 = vrot.lane.b32.xlu0 %v593, 4
      %v706 = vpop.permute.xlu0 %705
      %707 = vrot.lane.b32.xlu0 %v596, 4
      %v708 = vpop.permute.xlu0 %707
      %709 = vrot.lane.b32.xlu0 %v599, 4
      %v710 = vpop.permute.xlu0 %709
      %711 = vrot.lane.b32.xlu0 %v602, 4
      %v712 = vpop.permute.xlu0 %711
      %713 = vrot.lane.b32.xlu0 %v605, 4
      %v714 = vpop.permute.xlu0 %713
      %715 = vrot.lane.b32.xlu0 %v608, 4
      %v716 = vpop.permute.xlu0 %715
      %717 = vrot.lane.b32.xlu0 %v611, 4
      %v718 = vpop.permute.xlu0 %717
      %719 = vrot.lane.b32.xlu0 %v614, 4
      %v720 = vpop.permute.xlu0 %719
      %721 = vrot.lane.b32.xlu0 %v617, 4
      %v722 = vpop.permute.xlu0 %721
      %723 = vrot.lane.b32.xlu0 %v620, 4
      %v724 = vpop.permute.xlu0 %723
      %725 = vrot.lane.b32.xlu0 %v623, 4
      %v726 = vpop.permute.xlu0 %725
      %727 = vrot.lane.b32.xlu0 %v626, 4
      %v728 = vpop.permute.xlu0 %727
      %729 = vrot.lane.b32.xlu0 %v629, 4
      %v730 = vpop.permute.xlu0 %729
      %731 = vrot.lane.b32.xlu0 %v632, 4
      %v732 = vpop.permute.xlu0 %731
      %733 = vrot.lane.b32.xlu0 %v635, 4
      %v734 = vpop.permute.xlu0 %733
      %735 = vrot.lane.b32.xlu0 %v638, 4
      %v736 = vpop.permute.xlu0 %735
      %737 = vrot.lane.b32.xlu0 %v641, 4
      %v738 = vpop.permute.xlu0 %737
      %v771 = vsub.f32 %v548, %v676
      %v772 = vsub.f32 %v551, %v678
      %v773 = vsub.f32 %v554, %v680
      %v774 = vsub.f32 %v557, %v682
      %v775 = vsub.f32 %v560, %v684
      %v776 = vsub.f32 %v563, %v686
      %v777 = vsub.f32 %v566, %v688
      %v778 = vsub.f32 %v569, %v690
      %v779 = vsub.f32 %v572, %v692
      %v780 = vsub.f32 %v575, %v694
      %v781 = vsub.f32 %v578, %v696
      %v782 = vsub.f32 %v581, %v698
      %v783 = vsub.f32 %v584, %v700
      %v784 = vsub.f32 %v587, %v702
      %v785 = vsub.f32 %v590, %v704
      %v786 = vsub.f32 %v593, %v706
      %v787 = vsub.f32 %v596, %v708
      %v788 = vsub.f32 %v599, %v710
      %v789 = vsub.f32 %v602, %v712
      %v790 = vsub.f32 %v605, %v714
      %v791 = vsub.f32 %v608, %v716
      %v792 = vsub.f32 %v611, %v718
      %v793 = vsub.f32 %v614, %v720
      %v794 = vsub.f32 %v617, %v722
      %v795 = vsub.f32 %v620, %v724
      %v796 = vsub.f32 %v623, %v726
      %v797 = vsub.f32 %v626, %v728
      %v798 = vsub.f32 %v629, %v730
      %v799 = vsub.f32 %v632, %v732
      %v800 = vsub.f32 %v635, %v734
      %v801 = vsub.f32 %v638, %v736
      %v802 = vsub.f32 %v641, %v738
      %v803 = vmul.f32 %v771, 1.442695
      %v804 = vpow.pop %v803
      %v805 = vmul.f32 %v772, 1.442695
      %v806 = vpow.pop %v805
      %v807 = vmul.f32 %v773, 1.442695
      %v808 = vpow.pop %v807
      %v809 = vmul.f32 %v774, 1.442695
      %v810 = vpow.pop %v809
      %v811 = vmul.f32 %v775, 1.442695
      %v812 = vpow.pop %v811
      %v813 = vmul.f32 %v776, 1.442695
      %v814 = vpow.pop %v813
      %v815 = vmul.f32 %v777, 1.442695
      %v816 = vpow.pop %v815
      %v817 = vmul.f32 %v778, 1.442695
      %v818 = vpow.pop %v817
      %v819 = vmul.f32 %v779, 1.442695
      %v820 = vpow.pop %v819
      %v821 = vmul.f32 %v780, 1.442695
      %v822 = vpow.pop %v821
      %v823 = vmul.f32 %v781, 1.442695
      %v824 = vpow.pop %v823
      %v825 = vmul.f32 %v782, 1.442695
      %v826 = vpow.pop %v825
      %v827 = vmul.f32 %v783, 1.442695
      %v828 = vpow.pop %v827
      %v829 = vmul.f32 %v784, 1.442695
      %v830 = vpow.pop %v829
      %v831 = vmul.f32 %v785, 1.442695
      %v832 = vpow.pop %v831
      %v833 = vmul.f32 %v786, 1.442695
      %v834 = vpow.pop %v833
      %v835 = vmul.f32 %v787, 1.442695
      %v836 = vpow.pop %v835
      %v837 = vmul.f32 %v788, 1.442695
      %v838 = vpow.pop %v837
      %v839 = vmul.f32 %v789, 1.442695
      %v840 = vpow.pop %v839
      %v841 = vmul.f32 %v790, 1.442695
      %v842 = vpow.pop %v841
      %v843 = vmul.f32 %v791, 1.442695
      %v844 = vpow.pop %v843
      %v845 = vmul.f32 %v792, 1.442695
      %v846 = vpow.pop %v845
      %v847 = vmul.f32 %v793, 1.442695
      %v848 = vpow.pop %v847
      %v849 = vmul.f32 %v794, 1.442695
      %v850 = vpow.pop %v849
      %v851 = vmul.f32 %v795, 1.442695
      %v852 = vpow.pop %v851
      %v853 = vmul.f32 %v796, 1.442695
      %v854 = vpow.pop %v853
      %v855 = vmul.f32 %v797, 1.442695
      %v856 = vpow.pop %v855
      %v857 = vmul.f32 %v798, 1.442695
      %v858 = vpow.pop %v857
      %v859 = vmul.f32 %v799, 1.442695
      %v860 = vpow.pop %v859
      %v861 = vmul.f32 %v800, 1.442695
      %v862 = vpow.pop %v861
      %v863 = vmul.f32 %v801, 1.442695
      %v864 = vpow.pop %v863
      %v865 = vmul.f32 %v802, 1.442695
      %v866 = vpow.pop %v865
      %v867 = vadd.f32 %v804, 1.0
      %v868 = vadd.f32 %v806, 1.0
      %v869 = vadd.f32 %v808, 1.0
      %v870 = vadd.f32 %v810, 1.0
      %v871 = vadd.f32 %v812, 1.0
      %v872 = vadd.f32 %v814, 1.0
      %v873 = vadd.f32 %v816, 1.0
      %v874 = vadd.f32 %v818, 1.0
      %v875 = vadd.f32 %v820, 1.0
      %v876 = vadd.f32 %v822, 1.0
      %v877 = vadd.f32 %v824, 1.0
      %v878 = vadd.f32 %v826, 1.0
      %v879 = vadd.f32 %v828, 1.0
      %v880 = vadd.f32 %v830, 1.0
      %v881 = vadd.f32 %v832, 1.0
      %v882 = vadd.f32 %v834, 1.0
      %v883 = vadd.f32 %v836, 1.0
      %v884 = vadd.f32 %v838, 1.0
      %v885 = vadd.f32 %v840, 1.0
      %v886 = vadd.f32 %v842, 1.0
      %v887 = vadd.f32 %v844, 1.0
      %v888 = vadd.f32 %v846, 1.0
      %v889 = vadd.f32 %v848, 1.0
      %v890 = vadd.f32 %v850, 1.0
      %v891 = vadd.f32 %v852, 1.0
      %v892 = vadd.f32 %v854, 1.0
      %v893 = vadd.f32 %v856, 1.0
      %v894 = vadd.f32 %v858, 1.0
      %v895 = vadd.f32 %v860, 1.0
      %v896 = vadd.f32 %v862, 1.0
      %v897 = vadd.f32 %v864, 1.0
      %v898 = vadd.f32 %v866, 1.0
      %v899 = vrcp.pop %v867
      %v900 = vmul.f32 %v867, %v899
      %v901 = vsub.f32 1.0, %v900
      %v902 = vmul.f32 %v899, %v901
      %v903 = vadd.f32 %v899, %v902
      %vm904 = vweird.f32 %v867
      %vm905 = vweird.f32 %v899
      %vm906 = vmor %vm904, %vm905
      %v907 = vsel %vm906, %v899, %v903
      %v908 = vand.u32 2147483647, %v867
      %vm909 = vcmp.eq.f32.partialorder %v908, 8.507059e+37
      %v910 = vand.u32 %v867, 2147483648
      %v911 = vor.u32 1.1754944e-38, %v910
      %v912 = vsel %vm909, %v911, %v907
      %v913 = vmul.f32 1.0, %v912
      %v914 = vrcp.pop %v868
      %v915 = vmul.f32 %v868, %v914
      %v916 = vsub.f32 1.0, %v915
      %v917 = vmul.f32 %v914, %v916
      %v918 = vadd.f32 %v914, %v917
      %vm919 = vweird.f32 %v868
      %vm920 = vweird.f32 %v914
      %vm921 = vmor %vm919, %vm920
      %v922 = vsel %vm921, %v914, %v918
      %v923 = vand.u32 2147483647, %v868
      %vm924 = vcmp.eq.f32.partialorder %v923, 8.507059e+37
      %v925 = vand.u32 %v868, 2147483648
      %v926 = vor.u32 1.1754944e-38, %v925
      %v927 = vsel %vm924, %v926, %v922
      %v928 = vmul.f32 1.0, %v927
      %v929 = vrcp.pop %v869
      %v930 = vmul.f32 %v869, %v929
      %v931 = vsub.f32 1.0, %v930
      %v932 = vmul.f32 %v929, %v931
      %v933 = vadd.f32 %v929, %v932
      %vm934 = vweird.f32 %v869
      %vm935 = vweird.f32 %v929
      %vm936 = vmor %vm934, %vm935
      %v937 = vsel %vm936, %v929, %v933
      %v938 = vand.u32 2147483647, %v869
      %vm939 = vcmp.eq.f32.partialorder %v938, 8.507059e+37
      %v940 = vand.u32 %v869, 2147483648
      %v941 = vor.u32 1.1754944e-38, %v940
      %v942 = vsel %vm939, %v941, %v937
      %v943 = vmul.f32 1.0, %v942
      %v944 = vrcp.pop %v870
      %v945 = vmul.f32 %v870, %v944
      %v946 = vsub.f32 1.0, %v945
      %v947 = vmul.f32 %v944, %v946
      %v948 = vadd.f32 %v944, %v947
      %vm949 = vweird.f32 %v870
      %vm950 = vweird.f32 %v944
      %vm951 = vmor %vm949, %vm950
      %v952 = vsel %vm951, %v944, %v948
      %v953 = vand.u32 2147483647, %v870
      %vm954 = vcmp.eq.f32.partialorder %v953, 8.507059e+37
      %v955 = vand.u32 %v870, 2147483648
      %v956 = vor.u32 1.1754944e-38, %v955
      %v957 = vsel %vm954, %v956, %v952
      %v958 = vmul.f32 1.0, %v957
      %v959 = vrcp.pop %v871
      %v960 = vmul.f32 %v871, %v959
      %v961 = vsub.f32 1.0, %v960
      %v962 = vmul.f32 %v959, %v961
      %v963 = vadd.f32 %v959, %v962
      %vm964 = vweird.f32 %v871
      %vm965 = vweird.f32 %v959
      %vm966 = vmor %vm964, %vm965
      %v967 = vsel %vm966, %v959, %v963
      %v968 = vand.u32 2147483647, %v871
      %vm969 = vcmp.eq.f32.partialorder %v968, 8.507059e+37
      %v970 = vand.u32 %v871, 2147483648
      %v971 = vor.u32 1.1754944e-38, %v970
      %v972 = vsel %vm969, %v971, %v967
      %v973 = vmul.f32 1.0, %v972
      %v974 = vrcp.pop %v872
      %v975 = vmul.f32 %v872, %v974
      %v976 = vsub.f32 1.0, %v975
      %v977 = vmul.f32 %v974, %v976
      %v978 = vadd.f32 %v974, %v977
      %vm979 = vweird.f32 %v872
      %vm980 = vweird.f32 %v974
      %vm981 = vmor %vm979, %vm980
      %v982 = vsel %vm981, %v974, %v978
      %v983 = vand.u32 2147483647, %v872
      %vm984 = vcmp.eq.f32.partialorder %v983, 8.507059e+37
      %v985 = vand.u32 %v872, 2147483648
      %v986 = vor.u32 1.1754944e-38, %v985
      %v987 = vsel %vm984, %v986, %v982
      %v988 = vmul.f32 1.0, %v987
      %v989 = vrcp.pop %v873
      %v990 = vmul.f32 %v873, %v989
      %v991 = vsub.f32 1.0, %v990
      %v992 = vmul.f32 %v989, %v991
      %v993 = vadd.f32 %v989, %v992
      %vm994 = vweird.f32 %v873
      %vm995 = vweird.f32 %v989
      %vm996 = vmor %vm994, %vm995
      %v997 = vsel %vm996, %v989, %v993
      %v998 = vand.u32 2147483647, %v873
      %vm999 = vcmp.eq.f32.partialorder %v998, 8.507059e+37
      %v1000 = vand.u32 %v873, 2147483648
      %v1001 = vor.u32 1.1754944e-38, %v1000
      %v1002 = vsel %vm999, %v1001, %v997
      %v1003 = vmul.f32 1.0, %v1002
      %v1004 = vrcp.pop %v874
      %v1005 = vmul.f32 %v874, %v1004
      %v1006 = vsub.f32 1.0, %v1005
      %v1007 = vmul.f32 %v1004, %v1006
      %v1008 = vadd.f32 %v1004, %v1007
      %vm1009 = vweird.f32 %v874
      %vm1010 = vweird.f32 %v1004
      %vm1011 = vmor %vm1009, %vm1010
      %v1012 = vsel %vm1011, %v1004, %v1008
      %v1013 = vand.u32 2147483647, %v874
      %vm1014 = vcmp.eq.f32.partialorder %v1013, 8.507059e+37
      %v1015 = vand.u32 %v874, 2147483648
      %v1016 = vor.u32 1.1754944e-38, %v1015
      %v1017 = vsel %vm1014, %v1016, %v1012
      %v1018 = vmul.f32 1.0, %v1017
      %v1019 = vrcp.pop %v875
      %v1020 = vmul.f32 %v875, %v1019
      %v1021 = vsub.f32 1.0, %v1020
      %v1022 = vmul.f32 %v1019, %v1021
      %v1023 = vadd.f32 %v1019, %v1022
      %vm1024 = vweird.f32 %v875
      %vm1025 = vweird.f32 %v1019
      %vm1026 = vmor %vm1024, %vm1025
      %v1027 = vsel %vm1026, %v1019, %v1023
      %v1028 = vand.u32 2147483647, %v875
      %vm1029 = vcmp.eq.f32.partialorder %v1028, 8.507059e+37
      %v1030 = vand.u32 %v875, 2147483648
      %v1031 = vor.u32 1.1754944e-38, %v1030
      %v1032 = vsel %vm1029, %v1031, %v1027
      %v1033 = vmul.f32 1.0, %v1032
      %v1034 = vrcp.pop %v876
      %v1035 = vmul.f32 %v876, %v1034
      %v1036 = vsub.f32 1.0, %v1035
      %v1037 = vmul.f32 %v1034, %v1036
      %v1038 = vadd.f32 %v1034, %v1037
      %vm1039 = vweird.f32 %v876
      %vm1040 = vweird.f32 %v1034
      %vm1041 = vmor %vm1039, %vm1040
      %v1042 = vsel %vm1041, %v1034, %v1038
      %v1043 = vand.u32 2147483647, %v876
      %vm1044 = vcmp.eq.f32.partialorder %v1043, 8.507059e+37
      %v1045 = vand.u32 %v876, 2147483648
      %v1046 = vor.u32 1.1754944e-38, %v1045
      %v1047 = vsel %vm1044, %v1046, %v1042
      %v1048 = vmul.f32 1.0, %v1047
      %v1049 = vrcp.pop %v877
      %v1050 = vmul.f32 %v877, %v1049
      %v1051 = vsub.f32 1.0, %v1050
      %v1052 = vmul.f32 %v1049, %v1051
      %v1053 = vadd.f32 %v1049, %v1052
      %vm1054 = vweird.f32 %v877
      %vm1055 = vweird.f32 %v1049
      %vm1056 = vmor %vm1054, %vm1055
      %v1057 = vsel %vm1056, %v1049, %v1053
      %v1058 = vand.u32 2147483647, %v877
      %vm1059 = vcmp.eq.f32.partialorder %v1058, 8.507059e+37
      %v1060 = vand.u32 %v877, 2147483648
      %v1061 = vor.u32 1.1754944e-38, %v1060
      %v1062 = vsel %vm1059, %v1061, %v1057
      %v1063 = vmul.f32 1.0, %v1062
      %v1064 = vrcp.pop %v878
      %v1065 = vmul.f32 %v878, %v1064
      %v1066 = vsub.f32 1.0, %v1065
      %v1067 = vmul.f32 %v1064, %v1066
      %v1068 = vadd.f32 %v1064, %v1067
      %vm1069 = vweird.f32 %v878
      %vm1070 = vweird.f32 %v1064
      %vm1071 = vmor %vm1069, %vm1070
      %v1072 = vsel %vm1071, %v1064, %v1068
      %v1073 = vand.u32 2147483647, %v878
      %vm1074 = vcmp.eq.f32.partialorder %v1073, 8.507059e+37
      %v1075 = vand.u32 %v878, 2147483648
      %v1076 = vor.u32 1.1754944e-38, %v1075
      %v1077 = vsel %vm1074, %v1076, %v1072
      %v1078 = vmul.f32 1.0, %v1077
      %v1079 = vrcp.pop %v879
      %v1080 = vmul.f32 %v879, %v1079
      %v1081 = vsub.f32 1.0, %v1080
      %v1082 = vmul.f32 %v1079, %v1081
      %v1083 = vadd.f32 %v1079, %v1082
      %vm1084 = vweird.f32 %v879
      %vm1085 = vweird.f32 %v1079
      %vm1086 = vmor %vm1084, %vm1085
      %v1087 = vsel %vm1086, %v1079, %v1083
      %v1088 = vand.u32 2147483647, %v879
      %vm1089 = vcmp.eq.f32.partialorder %v1088, 8.507059e+37
      %v1090 = vand.u32 %v879, 2147483648
      %v1091 = vor.u32 1.1754944e-38, %v1090
      %v1092 = vsel %vm1089, %v1091, %v1087
      %v1093 = vmul.f32 1.0, %v1092
      %v1094 = vrcp.pop %v880
      %v1095 = vmul.f32 %v880, %v1094
      %v1096 = vsub.f32 1.0, %v1095
      %v1097 = vmul.f32 %v1094, %v1096
      %v1098 = vadd.f32 %v1094, %v1097
      %vm1099 = vweird.f32 %v880
      %vm1100 = vweird.f32 %v1094
      %vm1101 = vmor %vm1099, %vm1100
      %v1102 = vsel %vm1101, %v1094, %v1098
      %v1103 = vand.u32 2147483647, %v880
      %vm1104 = vcmp.eq.f32.partialorder %v1103, 8.507059e+37
      %v1105 = vand.u32 %v880, 2147483648
      %v1106 = vor.u32 1.1754944e-38, %v1105
      %v1107 = vsel %vm1104, %v1106, %v1102
      %v1108 = vmul.f32 1.0, %v1107
      %v1109 = vrcp.pop %v881
      %v1110 = vmul.f32 %v881, %v1109
      %v1111 = vsub.f32 1.0, %v1110
      %v1112 = vmul.f32 %v1109, %v1111
      %v1113 = vadd.f32 %v1109, %v1112
      %vm1114 = vweird.f32 %v881
      %vm1115 = vweird.f32 %v1109
      %vm1116 = vmor %vm1114, %vm1115
      %v1117 = vsel %vm1116, %v1109, %v1113
      %v1118 = vand.u32 2147483647, %v881
      %vm1119 = vcmp.eq.f32.partialorder %v1118, 8.507059e+37
      %v1120 = vand.u32 %v881, 2147483648
      %v1121 = vor.u32 1.1754944e-38, %v1120
      %v1122 = vsel %vm1119, %v1121, %v1117
      %v1123 = vmul.f32 1.0, %v1122
      %v1124 = vrcp.pop %v882
      %v1125 = vmul.f32 %v882, %v1124
      %v1126 = vsub.f32 1.0, %v1125
      %v1127 = vmul.f32 %v1124, %v1126
      %v1128 = vadd.f32 %v1124, %v1127
      %vm1129 = vweird.f32 %v882
      %vm1130 = vweird.f32 %v1124
      %vm1131 = vmor %vm1129, %vm1130
      %v1132 = vsel %vm1131, %v1124, %v1128
      %v1133 = vand.u32 2147483647, %v882
      %vm1134 = vcmp.eq.f32.partialorder %v1133, 8.507059e+37
      %v1135 = vand.u32 %v882, 2147483648
      %v1136 = vor.u32 1.1754944e-38, %v1135
      %v1137 = vsel %vm1134, %v1136, %v1132
      %v1138 = vmul.f32 1.0, %v1137
      %v1139 = vrcp.pop %v883
      %v1140 = vmul.f32 %v883, %v1139
      %v1141 = vsub.f32 1.0, %v1140
      %v1142 = vmul.f32 %v1139, %v1141
      %v1143 = vadd.f32 %v1139, %v1142
      %vm1144 = vweird.f32 %v883
      %vm1145 = vweird.f32 %v1139
      %vm1146 = vmor %vm1144, %vm1145
      %v1147 = vsel %vm1146, %v1139, %v1143
      %v1148 = vand.u32 2147483647, %v883
      %vm1149 = vcmp.eq.f32.partialorder %v1148, 8.507059e+37
      %v1150 = vand.u32 %v883, 2147483648
      %v1151 = vor.u32 1.1754944e-38, %v1150
      %v1152 = vsel %vm1149, %v1151, %v1147
      %v1153 = vmul.f32 1.0, %v1152
      %v1154 = vrcp.pop %v884
      %v1155 = vmul.f32 %v884, %v1154
      %v1156 = vsub.f32 1.0, %v1155
      %v1157 = vmul.f32 %v1154, %v1156
      %v1158 = vadd.f32 %v1154, %v1157
      %vm1159 = vweird.f32 %v884
      %vm1160 = vweird.f32 %v1154
      %vm1161 = vmor %vm1159, %vm1160
      %v1162 = vsel %vm1161, %v1154, %v1158
      %v1163 = vand.u32 2147483647, %v884
      %vm1164 = vcmp.eq.f32.partialorder %v1163, 8.507059e+37
      %v1165 = vand.u32 %v884, 2147483648
      %v1166 = vor.u32 1.1754944e-38, %v1165
      %v1167 = vsel %vm1164, %v1166, %v1162
      %v1168 = vmul.f32 1.0, %v1167
      %v1169 = vrcp.pop %v885
      %v1170 = vmul.f32 %v885, %v1169
      %v1171 = vsub.f32 1.0, %v1170
      %v1172 = vmul.f32 %v1169, %v1171
      %v1173 = vadd.f32 %v1169, %v1172
      %vm1174 = vweird.f32 %v885
      %vm1175 = vweird.f32 %v1169
      %vm1176 = vmor %vm1174, %vm1175
      %v1177 = vsel %vm1176, %v1169, %v1173
      %v1178 = vand.u32 2147483647, %v885
      %vm1179 = vcmp.eq.f32.partialorder %v1178, 8.507059e+37
      %v1180 = vand.u32 %v885, 2147483648
      %v1181 = vor.u32 1.1754944e-38, %v1180
      %v1182 = vsel %vm1179, %v1181, %v1177
      %v1183 = vmul.f32 1.0, %v1182
      %v1184 = vrcp.pop %v886
      %v1185 = vmul.f32 %v886, %v1184
      %v1186 = vsub.f32 1.0, %v1185
      %v1187 = vmul.f32 %v1184, %v1186
      %v1188 = vadd.f32 %v1184, %v1187
      %vm1189 = vweird.f32 %v886
      %vm1190 = vweird.f32 %v1184
      %vm1191 = vmor %vm1189, %vm1190
      %v1192 = vsel %vm1191, %v1184, %v1188
      %v1193 = vand.u32 2147483647, %v886
      %vm1194 = vcmp.eq.f32.partialorder %v1193, 8.507059e+37
      %v1195 = vand.u32 %v886, 2147483648
      %v1196 = vor.u32 1.1754944e-38, %v1195
      %v1197 = vsel %vm1194, %v1196, %v1192
      %v1198 = vmul.f32 1.0, %v1197
      %v1199 = vrcp.pop %v887
      %v1200 = vmul.f32 %v887, %v1199
      %v1201 = vsub.f32 1.0, %v1200
      %v1202 = vmul.f32 %v1199, %v1201
      %v1203 = vadd.f32 %v1199, %v1202
      %vm1204 = vweird.f32 %v887
      %vm1205 = vweird.f32 %v1199
      %vm1206 = vmor %vm1204, %vm1205
      %v1207 = vsel %vm1206, %v1199, %v1203
      %v1208 = vand.u32 2147483647, %v887
      %vm1209 = vcmp.eq.f32.partialorder %v1208, 8.507059e+37
      %v1210 = vand.u32 %v887, 2147483648
      %v1211 = vor.u32 1.1754944e-38, %v1210
      %v1212 = vsel %vm1209, %v1211, %v1207
      %v1213 = vmul.f32 1.0, %v1212
      %v1214 = vrcp.pop %v888
      %v1215 = vmul.f32 %v888, %v1214
      %v1216 = vsub.f32 1.0, %v1215
      %v1217 = vmul.f32 %v1214, %v1216
      %v1218 = vadd.f32 %v1214, %v1217
      %vm1219 = vweird.f32 %v888
      %vm1220 = vweird.f32 %v1214
      %vm1221 = vmor %vm1219, %vm1220
      %v1222 = vsel %vm1221, %v1214, %v1218
      %v1223 = vand.u32 2147483647, %v888
      %vm1224 = vcmp.eq.f32.partialorder %v1223, 8.507059e+37
      %v1225 = vand.u32 %v888, 2147483648
      %v1226 = vor.u32 1.1754944e-38, %v1225
      %v1227 = vsel %vm1224, %v1226, %v1222
      %v1228 = vmul.f32 1.0, %v1227
      %v1229 = vrcp.pop %v889
      %v1230 = vmul.f32 %v889, %v1229
      %v1231 = vsub.f32 1.0, %v1230
      %v1232 = vmul.f32 %v1229, %v1231
      %v1233 = vadd.f32 %v1229, %v1232
      %vm1234 = vweird.f32 %v889
      %vm1235 = vweird.f32 %v1229
      %vm1236 = vmor %vm1234, %vm1235
      %v1237 = vsel %vm1236, %v1229, %v1233
      %v1238 = vand.u32 2147483647, %v889
      %vm1239 = vcmp.eq.f32.partialorder %v1238, 8.507059e+37
      %v1240 = vand.u32 %v889, 2147483648
      %v1241 = vor.u32 1.1754944e-38, %v1240
      %v1242 = vsel %vm1239, %v1241, %v1237
      %v1243 = vmul.f32 1.0, %v1242
      %v1244 = vrcp.pop %v890
      %v1245 = vmul.f32 %v890, %v1244
      %v1246 = vsub.f32 1.0, %v1245
      %v1247 = vmul.f32 %v1244, %v1246
      %v1248 = vadd.f32 %v1244, %v1247
      %vm1249 = vweird.f32 %v890
      %vm1250 = vweird.f32 %v1244
      %vm1251 = vmor %vm1249, %vm1250
      %v1252 = vsel %vm1251, %v1244, %v1248
      %v1253 = vand.u32 2147483647, %v890
      %vm1254 = vcmp.eq.f32.partialorder %v1253, 8.507059e+37
      %v1255 = vand.u32 %v890, 2147483648
      %v1256 = vor.u32 1.1754944e-38, %v1255
      %v1257 = vsel %vm1254, %v1256, %v1252
      %v1258 = vmul.f32 1.0, %v1257
      %v1259 = vrcp.pop %v891
      %v1260 = vmul.f32 %v891, %v1259
      %v1261 = vsub.f32 1.0, %v1260
      %v1262 = vmul.f32 %v1259, %v1261
      %v1263 = vadd.f32 %v1259, %v1262
      %vm1264 = vweird.f32 %v891
      %vm1265 = vweird.f32 %v1259
      %vm1266 = vmor %vm1264, %vm1265
      %v1267 = vsel %vm1266, %v1259, %v1263
      %v1268 = vand.u32 2147483647, %v891
      %vm1269 = vcmp.eq.f32.partialorder %v1268, 8.507059e+37
      %v1270 = vand.u32 %v891, 2147483648
      %v1271 = vor.u32 1.1754944e-38, %v1270
      %v1272 = vsel %vm1269, %v1271, %v1267
      %v1273 = vmul.f32 1.0, %v1272
      %v1274 = vrcp.pop %v892
      %v1275 = vmul.f32 %v892, %v1274
      %v1276 = vsub.f32 1.0, %v1275
      %v1277 = vmul.f32 %v1274, %v1276
      %v1278 = vadd.f32 %v1274, %v1277
      %vm1279 = vweird.f32 %v892
      %vm1280 = vweird.f32 %v1274
      %vm1281 = vmor %vm1279, %vm1280
      %v1282 = vsel %vm1281, %v1274, %v1278
      %v1283 = vand.u32 2147483647, %v892
      %vm1284 = vcmp.eq.f32.partialorder %v1283, 8.507059e+37
      %v1285 = vand.u32 %v892, 2147483648
      %v1286 = vor.u32 1.1754944e-38, %v1285
      %v1287 = vsel %vm1284, %v1286, %v1282
      %v1288 = vmul.f32 1.0, %v1287
      %v1289 = vrcp.pop %v893
      %v1290 = vmul.f32 %v893, %v1289
      %v1291 = vsub.f32 1.0, %v1290
      %v1292 = vmul.f32 %v1289, %v1291
      %v1293 = vadd.f32 %v1289, %v1292
      %vm1294 = vweird.f32 %v893
      %vm1295 = vweird.f32 %v1289
      %vm1296 = vmor %vm1294, %vm1295
      %v1297 = vsel %vm1296, %v1289, %v1293
      %v1298 = vand.u32 2147483647, %v893
      %vm1299 = vcmp.eq.f32.partialorder %v1298, 8.507059e+37
      %v1300 = vand.u32 %v893, 2147483648
      %v1301 = vor.u32 1.1754944e-38, %v1300
      %v1302 = vsel %vm1299, %v1301, %v1297
      %v1303 = vmul.f32 1.0, %v1302
      %v1304 = vrcp.pop %v894
      %v1305 = vmul.f32 %v894, %v1304
      %v1306 = vsub.f32 1.0, %v1305
      %v1307 = vmul.f32 %v1304, %v1306
      %v1308 = vadd.f32 %v1304, %v1307
      %vm1309 = vweird.f32 %v894
      %vm1310 = vweird.f32 %v1304
      %vm1311 = vmor %vm1309, %vm1310
      %v1312 = vsel %vm1311, %v1304, %v1308
      %v1313 = vand.u32 2147483647, %v894
      %vm1314 = vcmp.eq.f32.partialorder %v1313, 8.507059e+37
      %v1315 = vand.u32 %v894, 2147483648
      %v1316 = vor.u32 1.1754944e-38, %v1315
      %v1317 = vsel %vm1314, %v1316, %v1312
      %v1318 = vmul.f32 1.0, %v1317
      %v1319 = vrcp.pop %v895
      %v1320 = vmul.f32 %v895, %v1319
      %v1321 = vsub.f32 1.0, %v1320
      %v1322 = vmul.f32 %v1319, %v1321
      %v1323 = vadd.f32 %v1319, %v1322
      %vm1324 = vweird.f32 %v895
      %vm1325 = vweird.f32 %v1319
      %vm1326 = vmor %vm1324, %vm1325
      %v1327 = vsel %vm1326, %v1319, %v1323
      %v1328 = vand.u32 2147483647, %v895
      %vm1329 = vcmp.eq.f32.partialorder %v1328, 8.507059e+37
      %v1330 = vand.u32 %v895, 2147483648
      %v1331 = vor.u32 1.1754944e-38, %v1330
      %v1332 = vsel %vm1329, %v1331, %v1327
      %v1333 = vmul.f32 1.0, %v1332
      %v1334 = vrcp.pop %v896
      %v1335 = vmul.f32 %v896, %v1334
      %v1336 = vsub.f32 1.0, %v1335
      %v1337 = vmul.f32 %v1334, %v1336
      %v1338 = vadd.f32 %v1334, %v1337
      %vm1339 = vweird.f32 %v896
      %vm1340 = vweird.f32 %v1334
      %vm1341 = vmor %vm1339, %vm1340
      %v1342 = vsel %vm1341, %v1334, %v1338
      %v1343 = vand.u32 2147483647, %v896
      %vm1344 = vcmp.eq.f32.partialorder %v1343, 8.507059e+37
      %v1345 = vand.u32 %v896, 2147483648
      %v1346 = vor.u32 1.1754944e-38, %v1345
      %v1347 = vsel %vm1344, %v1346, %v1342
      %v1348 = vmul.f32 1.0, %v1347
      %v1349 = vrcp.pop %v897
      %v1350 = vmul.f32 %v897, %v1349
      %v1351 = vsub.f32 1.0, %v1350
      %v1352 = vmul.f32 %v1349, %v1351
      %v1353 = vadd.f32 %v1349, %v1352
      %vm1354 = vweird.f32 %v897
      %vm1355 = vweird.f32 %v1349
      %vm1356 = vmor %vm1354, %vm1355
      %v1357 = vsel %vm1356, %v1349, %v1353
      %v1358 = vand.u32 2147483647, %v897
      %vm1359 = vcmp.eq.f32.partialorder %v1358, 8.507059e+37
      %v1360 = vand.u32 %v897, 2147483648
      %v1361 = vor.u32 1.1754944e-38, %v1360
      %v1362 = vsel %vm1359, %v1361, %v1357
      %v1363 = vmul.f32 1.0, %v1362
      %v1364 = vrcp.pop %v898
      %v1365 = vmul.f32 %v898, %v1364
      %v1366 = vsub.f32 1.0, %v1365
      %v1367 = vmul.f32 %v1364, %v1366
      %v1368 = vadd.f32 %v1364, %v1367
      %vm1369 = vweird.f32 %v898
      %vm1370 = vweird.f32 %v1364
      %vm1371 = vmor %vm1369, %vm1370
      %v1372 = vsel %vm1371, %v1364, %v1368
      %v1373 = vand.u32 2147483647, %v898
      %vm1374 = vcmp.eq.f32.partialorder %v1373, 8.507059e+37
      %v1375 = vand.u32 %v898, 2147483648
      %v1376 = vor.u32 1.1754944e-38, %v1375
      %v1377 = vsel %vm1374, %v1376, %v1372
      %v1378 = vmul.f32 1.0, %v1377
      %1411 = vrot.lane.b32.xlu0 %v913, 124
      %v1412 = vpop.permute.xlu0 %1411
      %1413 = vrot.lane.b32.xlu0 %v928, 124
      %v1414 = vpop.permute.xlu0 %1413
      %1415 = vrot.lane.b32.xlu0 %v943, 124
      %v1416 = vpop.permute.xlu0 %1415
      %1417 = vrot.lane.b32.xlu0 %v958, 124
      %v1418 = vpop.permute.xlu0 %1417
      %1419 = vrot.lane.b32.xlu0 %v973, 124
      %v1420 = vpop.permute.xlu0 %1419
      %1421 = vrot.lane.b32.xlu0 %v988, 124
      %v1422 = vpop.permute.xlu0 %1421
      %1423 = vrot.lane.b32.xlu0 %v1003, 124
      %v1424 = vpop.permute.xlu0 %1423
      %1425 = vrot.lane.b32.xlu0 %v1018, 124
      %v1426 = vpop.permute.xlu0 %1425
      %1427 = vrot.lane.b32.xlu0 %v1033, 124
      %v1428 = vpop.permute.xlu0 %1427
      %1429 = vrot.lane.b32.xlu0 %v1048, 124
      %v1430 = vpop.permute.xlu0 %1429
      %1431 = vrot.lane.b32.xlu0 %v1063, 124
      %v1432 = vpop.permute.xlu0 %1431
      %1433 = vrot.lane.b32.xlu0 %v1078, 124
      %v1434 = vpop.permute.xlu0 %1433
      %1435 = vrot.lane.b32.xlu0 %v1093, 124
      %v1436 = vpop.permute.xlu0 %1435
      %1437 = vrot.lane.b32.xlu0 %v1108, 124
      %v1438 = vpop.permute.xlu0 %1437
      %1439 = vrot.lane.b32.xlu0 %v1123, 124
      %v1440 = vpop.permute.xlu0 %1439
      %1441 = vrot.lane.b32.xlu0 %v1138, 124
      %v1442 = vpop.permute.xlu0 %1441
      %1443 = vrot.lane.b32.xlu0 %v1153, 124
      %v1444 = vpop.permute.xlu0 %1443
      %1445 = vrot.lane.b32.xlu0 %v1168, 124
      %v1446 = vpop.permute.xlu0 %1445
      %1447 = vrot.lane.b32.xlu0 %v1183, 124
      %v1448 = vpop.permute.xlu0 %1447
      %1449 = vrot.lane.b32.xlu0 %v1198, 124
      %v1450 = vpop.permute.xlu0 %1449
      %1451 = vrot.lane.b32.xlu0 %v1213, 124
      %v1452 = vpop.permute.xlu0 %1451
      %1453 = vrot.lane.b32.xlu0 %v1228, 124
      %v1454 = vpop.permute.xlu0 %1453
      %1455 = vrot.lane.b32.xlu0 %v1243, 124
      %v1456 = vpop.permute.xlu0 %1455
      %1457 = vrot.lane.b32.xlu0 %v1258, 124
      %v1458 = vpop.permute.xlu0 %1457
      %1459 = vrot.lane.b32.xlu0 %v1273, 124
      %v1460 = vpop.permute.xlu0 %1459
      %1461 = vrot.lane.b32.xlu0 %v1288, 124
      %v1462 = vpop.permute.xlu0 %1461
      %1463 = vrot.lane.b32.xlu0 %v1303, 124
      %v1464 = vpop.permute.xlu0 %1463
      %1465 = vrot.lane.b32.xlu0 %v1318, 124
      %v1466 = vpop.permute.xlu0 %1465
      %1467 = vrot.lane.b32.xlu0 %v1333, 124
      %v1468 = vpop.permute.xlu0 %1467
      %1469 = vrot.lane.b32.xlu0 %v1348, 124
      %v1470 = vpop.permute.xlu0 %1469
      %1471 = vrot.lane.b32.xlu0 %v1363, 124
      %v1472 = vpop.permute.xlu0 %1471
      %1473 = vrot.lane.b32.xlu0 %v1378, 124
      %v1474 = vpop.permute.xlu0 %1473
      %vm1507 = vcmask 31744
      %1508 = vst.msk [vmem:[%s145] sm:$0xff] %vm1507, %v1412
      %1509 = vst.msk [vmem:[%s145 + $0x8] sm:$0xff] %vm1507, %v1414
      %1510 = vst.msk [vmem:[%s145 + $0x10] sm:$0xff] %vm1507, %v1416
      %1511 = vst.msk [vmem:[%s145 + $0x18] sm:$0xff] %vm1507, %v1418
      %1512 = vst.msk [vmem:[%s145 + $0x20] sm:$0xff] %vm1507, %v1420
      %1513 = vst.msk [vmem:[%s145 + $0x28] sm:$0xff] %vm1507, %v1422
      %1514 = vst.msk [vmem:[%s145 + $0x30] sm:$0xff] %vm1507, %v1424
      %1515 = vst.msk [vmem:[%s145 + $0x38] sm:$0xff] %vm1507, %v1426
      %1516 = vst.msk [vmem:[%s145 + $0x40] sm:$0xff] %vm1507, %v1428
      %1517 = vst.msk [vmem:[%s145 + $0x48] sm:$0xff] %vm1507, %v1430
      %1518 = vst.msk [vmem:[%s145 + $0x50] sm:$0xff] %vm1507, %v1432
      %1519 = vst.msk [vmem:[%s145 + $0x58] sm:$0xff] %vm1507, %v1434
      %1520 = vst.msk [vmem:[%s145 + $0x60] sm:$0xff] %vm1507, %v1436
      %1521 = vst.msk [vmem:[%s145 + $0x68] sm:$0xff] %vm1507, %v1438
      %1522 = vst.msk [vmem:[%s145 + $0x70] sm:$0xff] %vm1507, %v1440
      %1523 = vst.msk [vmem:[%s145 + $0x78] sm:$0xff] %vm1507, %v1442
      %1524 = vst.msk [vmem:[%s145 + $0x80] sm:$0xff] %vm1507, %v1444
      %1525 = vst.msk [vmem:[%s145 + $0x88] sm:$0xff] %vm1507, %v1446
      %1526 = vst.msk [vmem:[%s145 + $0x90] sm:$0xff] %vm1507, %v1448
      %1527 = vst.msk [vmem:[%s145 + $0x98] sm:$0xff] %vm1507, %v1450
      %1528 = vst.msk [vmem:[%s145 + $0xa0] sm:$0xff] %vm1507, %v1452
      %1529 = vst.msk [vmem:[%s145 + $0xa8] sm:$0xff] %vm1507, %v1454
      %1530 = vst.msk [vmem:[%s145 + $0xb0] sm:$0xff] %vm1507, %v1456
      %1531 = vst.msk [vmem:[%s145 + $0xb8] sm:$0xff] %vm1507, %v1458
      %1532 = vst.msk [vmem:[%s145 + $0xc0] sm:$0xff] %vm1507, %v1460
      %1533 = vst.msk [vmem:[%s145 + $0xc8] sm:$0xff] %vm1507, %v1462
      %1534 = vst.msk [vmem:[%s145 + $0xd0] sm:$0xff] %vm1507, %v1464
      %1535 = vst.msk [vmem:[%s145 + $0xd8] sm:$0xff] %vm1507, %v1466
      %1536 = vst.msk [vmem:[%s145 + $0xe0] sm:$0xff] %vm1507, %v1468
      %1537 = vst.msk [vmem:[%s145 + $0xe8] sm:$0xff] %vm1507, %v1470
      %1538 = vst.msk [vmem:[%s145 + $0xf0] sm:$0xff] %vm1507, %v1472
      %1539 = vst.msk [vmem:[%s145 + $0xf8] sm:$0xff] %vm1507, %v1474
      %v1540 = vsub.f32 1.0, %v913
      %v1541 = vsub.f32 1.0, %v928
      %v1542 = vsub.f32 1.0, %v943
      %v1543 = vsub.f32 1.0, %v958
      %v1544 = vsub.f32 1.0, %v973
      %v1545 = vsub.f32 1.0, %v988
      %v1546 = vsub.f32 1.0, %v1003
      %v1547 = vsub.f32 1.0, %v1018
      %v1548 = vsub.f32 1.0, %v1033
      %v1549 = vsub.f32 1.0, %v1048
      %v1550 = vsub.f32 1.0, %v1063
      %v1551 = vsub.f32 1.0, %v1078
      %v1552 = vsub.f32 1.0, %v1093
      %v1553 = vsub.f32 1.0, %v1108
      %v1554 = vsub.f32 1.0, %v1123
      %v1555 = vsub.f32 1.0, %v1138
      %v1556 = vsub.f32 1.0, %v1153
      %v1557 = vsub.f32 1.0, %v1168
      %v1558 = vsub.f32 1.0, %v1183
      %v1559 = vsub.f32 1.0, %v1198
      %v1560 = vsub.f32 1.0, %v1213
      %v1561 = vsub.f32 1.0, %v1228
      %v1562 = vsub.f32 1.0, %v1243
      %v1563 = vsub.f32 1.0, %v1258
      %v1564 = vsub.f32 1.0, %v1273
      %v1565 = vsub.f32 1.0, %v1288
      %v1566 = vsub.f32 1.0, %v1303
      %v1567 = vsub.f32 1.0, %v1318
      %v1568 = vsub.f32 1.0, %v1333
      %v1569 = vsub.f32 1.0, %v1348
      %v1570 = vsub.f32 1.0, %v1363
      %v1571 = vsub.f32 1.0, %v1378
      %vm1572 = vcmask 64544
      %1573 = vst.msk [vmem:[%s145] sm:$0xff] %vm1572, %v1540
      %1574 = vst.msk [vmem:[%s145 + $0x8] sm:$0xff] %vm1572, %v1541
      %1575 = vst.msk [vmem:[%s145 + $0x10] sm:$0xff] %vm1572, %v1542
      %1576 = vst.msk [vmem:[%s145 + $0x18] sm:$0xff] %vm1572, %v1543
      %1577 = vst.msk [vmem:[%s145 + $0x20] sm:$0xff] %vm1572, %v1544
      %1578 = vst.msk [vmem:[%s145 + $0x28] sm:$0xff] %vm1572, %v1545
      %1579 = vst.msk [vmem:[%s145 + $0x30] sm:$0xff] %vm1572, %v1546
      %1580 = vst.msk [vmem:[%s145 + $0x38] sm:$0xff] %vm1572, %v1547
      %1581 = vst.msk [vmem:[%s145 + $0x40] sm:$0xff] %vm1572, %v1548
      %1582 = vst.msk [vmem:[%s145 + $0x48] sm:$0xff] %vm1572, %v1549
      %1583 = vst.msk [vmem:[%s145 + $0x50] sm:$0xff] %vm1572, %v1550
      %1584 = vst.msk [vmem:[%s145 + $0x58] sm:$0xff] %vm1572, %v1551
      %1585 = vst.msk [vmem:[%s145 + $0x60] sm:$0xff] %vm1572, %v1552
      %1586 = vst.msk [vmem:[%s145 + $0x68] sm:$0xff] %vm1572, %v1553
      %1587 = vst.msk [vmem:[%s145 + $0x70] sm:$0xff] %vm1572, %v1554
      %1588 = vst.msk [vmem:[%s145 + $0x78] sm:$0xff] %vm1572, %v1555
      %1589 = vst.msk [vmem:[%s145 + $0x80] sm:$0xff] %vm1572, %v1556
      %1590 = vst.msk [vmem:[%s145 + $0x88] sm:$0xff] %vm1572, %v1557
      %1591 = vst.msk [vmem:[%s145 + $0x90] sm:$0xff] %vm1572, %v1558
      %1592 = vst.msk [vmem:[%s145 + $0x98] sm:$0xff] %vm1572, %v1559
      %1593 = vst.msk [vmem:[%s145 + $0xa0] sm:$0xff] %vm1572, %v1560
      %1594 = vst.msk [vmem:[%s145 + $0xa8] sm:$0xff] %vm1572, %v1561
      %1595 = vst.msk [vmem:[%s145 + $0xb0] sm:$0xff] %vm1572, %v1562
      %1596 = vst.msk [vmem:[%s145 + $0xb8] sm:$0xff] %vm1572, %v1563
      %1597 = vst.msk [vmem:[%s145 + $0xc0] sm:$0xff] %vm1572, %v1564
      %1598 = vst.msk [vmem:[%s145 + $0xc8] sm:$0xff] %vm1572, %v1565
      %1599 = vst.msk [vmem:[%s145 + $0xd0] sm:$0xff] %vm1572, %v1566
      %1600 = vst.msk [vmem:[%s145 + $0xd8] sm:$0xff] %vm1572, %v1567
      %1601 = vst.msk [vmem:[%s145 + $0xe0] sm:$0xff] %vm1572, %v1568
      %1602 = vst.msk [vmem:[%s145 + $0xe8] sm:$0xff] %vm1572, %v1569
      %1603 = vst.msk [vmem:[%s145 + $0xf0] sm:$0xff] %vm1572, %v1570
      %1604 = vst.msk [vmem:[%s145 + $0xf8] sm:$0xff] %vm1572, %v1571
      %s1605 = smul.u32 32, %s13
      %p1606 = scmp.lt.s32.totalorder %s1605, 63
      %s1607 = scalar_select %p1606, %s1605, 63
      %s1608 = smul.addr %s1607, 8
      %s1609 = scalar_lea.vmem %s2, %s1608
      // Predicated region
      $region29: #{gatenet_forward_batched.1} parent=27 // pred_check
        %p1610 = pneg %p78
      $region30: #{gatenet_forward_batched.1} parent=27 // pred_check_branch
        %1612 = sbr.rel (%p1610) target = $region32
      $region31: #{gatenet_forward_batched.1} parent=27 // pred_region
        %s1613 = smul.u32 32, %s13
      $region32: #{gatenet_forward_batched.1} parent=27 // pred_fallthru
        _
    $region28: #{gatenet_forward_batched.1} parent=5 // pred_fallthru
      _
    %p1614 = scmp.le.s32.totalorder 2, %s8
    // Predicated region
    $region33: #{gatenet_forward_batched.1} parent=5 // pred_check
      %p1615 = pneg %p1614
    $region34: #{gatenet_forward_batched.1} parent=5 // pred_check_branch
      %1617 = sbr.rel (%p1615) target = $region36
    $region35: #{gatenet_forward_batched.1} parent=5 // pred_region
      %s1618 = ssub.s32 %s8, 2
      // Predicated region
      $region37: #{gatenet_forward_batched.1} parent=35 // pred_check
        %p1619 = pneg %p84
      $region38: #{gatenet_forward_batched.1} parent=35 // pred_check_branch
        %1621 = sbr.rel (%p1619) target = $region40
      $region39: #{gatenet_forward_batched.1} parent=35 // pred_region
        %s1622 = smul.u32 32, %s14
        %p1623 = scmp.lt.s32.totalorder %s1622, 63
        %s1624 = scalar_select %p1623, %s1622, 63
        %s1625 = smul.addr %s1624, 8
        %s1626 = scalar_lea.vmem %s2, %s1625
      $region40: #{gatenet_forward_batched.1} parent=35 // pred_fallthru
        _
    $region36: #{gatenet_forward_batched.1} parent=5 // pred_fallthru
      _
  $region6: #{gatenet_forward_batched.1} parent=0 // loop_footer
    %s12 = sadd.s32 1, %s8
  $region7: #{gatenet_forward_batched.1} parent=0 // loop_footer_branch
    %7 = sbr.rel target = $region3
  $region8: #{gatenet_forward_batched.1} parent=0 // loop_exit
    _

</llo_original>
